<compile_context>
chip_gen: v7x
topology: tpu7x:2x2x1
jax: 0.10.0
libtpu: 0.0.40
codegen_flags: <defaults>
</compile_context>

<pallas_src>
import jax
import jax.numpy as jnp
from jax.experimental import pallas as pl
from jax.experimental.pallas import tpu as pltpu

_LANE = 128       # lane width / feature-dim padding granularity
_SUBLANE = 8      # sublane granularity (min batch-tile granularity)
_TB_MAX = 256     # max batch tile (M dim fed to the MXU per grid step)


def _round_up(n, m):
    return ((n + m - 1) // m) * m


def _mlp_kernel(x_ref,
                w1_ref, b1_ref,
                w2_ref, b2_ref,
                w3_ref, b3_ref,
                w4_ref, b4_ref,
                out_ref):
    # layer 1: (TB, Din) @ (Din, 256) + (1, 256), ReLU
    h = jnp.dot(x_ref[...], w1_ref[...],
                preferred_element_type=jnp.float32) + b1_ref[...]
    h = jnp.maximum(h, 0.0).astype(w2_ref.dtype)

    # layer 2: (TB, 256) @ (256, 128) + (1, 128), ReLU
    h = jnp.dot(h, w2_ref[...],
                preferred_element_type=jnp.float32) + b2_ref[...]
    h = jnp.maximum(h, 0.0).astype(w3_ref.dtype)

    # layer 3: (TB, 128) @ (128, 128) + (1, 128), ReLU
    h = jnp.dot(h, w3_ref[...],
                preferred_element_type=jnp.float32) + b3_ref[...]
    h = jnp.maximum(h, 0.0).astype(w4_ref.dtype)

    # layer 4 (logits, no activation): (TB, 128) @ (128, 128) + (1, 128)
    out_ref[...] = (jnp.dot(h, w4_ref[...],
                            preferred_element_type=jnp.float32)
                    + b4_ref[...]).astype(out_ref.dtype)


def gtsrb_forward(x_nchw, params, *, compute_dtype=jnp.bfloat16):
    """GTSRB_NETWORK forward pass via a batch-tiled Pallas kernel.

    x_nchw : (B, C, H, W) float32
    params : dict with w1..w4 (in, out) and b1..b4 (1, out) float32 arrays
    """
    B = x_nchw.shape[0]
    # nn.Flatten(): (B, C, H, W) -> (B, C*H*W), row-major, same as PyTorch.
    x = x_nchw.reshape(B, -1).astype(jnp.float32)
    d_in = x.shape[1]
    out_dim = params["w4"].shape[1]

    # Padded (lane-dense) feature dims.
    d_in_p = _round_up(d_in, _LANE)
    h1_p = _round_up(params["w1"].shape[1], _LANE)   # 245 -> 256
    h2_p = _round_up(params["w2"].shape[1], _LANE)   # 128 -> 128
    h3_p = _round_up(params["w3"].shape[1], _LANE)   # 80  -> 128
    d_out_p = _round_up(out_dim, _LANE)              # 43  -> 128

    # Adaptive batch tile: at least one sublane group, at most _TB_MAX rows.
    tb = min(_TB_MAX, _round_up(max(B, _SUBLANE), _SUBLANE))
    b_p = _round_up(B, tb)                           # padded batch

    def pad2(a, rows, cols):
        return jnp.pad(a, ((0, rows - a.shape[0]), (0, cols - a.shape[1])))

    # Zero-pad (padded weight rows/cols and bias lanes are 0, so ReLU(0)=0
    # keeps the extra lanes inert).  Weights/x in bf16, biases stay f32.
    xp = pad2(x, b_p, d_in_p).astype(compute_dtype)
    w1 = pad2(params["w1"], d_in_p, h1_p).astype(compute_dtype)
    w2 = pad2(params["w2"], h1_p, h2_p).astype(compute_dtype)
    w3 = pad2(params["w3"], h2_p, h3_p).astype(compute_dtype)
    w4 = pad2(params["w4"], h3_p, d_out_p).astype(compute_dtype)
    b1 = pad2(params["b1"], 1, h1_p).astype(jnp.float32)
    b2 = pad2(params["b2"], 1, h2_p).astype(jnp.float32)
    b3 = pad2(params["b3"], 1, h3_p).astype(jnp.float32)
    b4 = pad2(params["b4"], 1, d_out_p).astype(jnp.float32)

    grid = (b_p // tb,)

    batch_map = lambda i: (i, 0)    # x / out blocks advance with the grid
    const_map = lambda i: (0, 0)    # weights/biases stay VMEM-resident

    in_specs = [
        pl.BlockSpec((tb, d_in_p), batch_map),
        pl.BlockSpec((d_in_p, h1_p), const_map),
        pl.BlockSpec((1, h1_p), const_map),
        pl.BlockSpec((h1_p, h2_p), const_map),
        pl.BlockSpec((1, h2_p), const_map),
        pl.BlockSpec((h2_p, h3_p), const_map),
        pl.BlockSpec((1, h3_p), const_map),
        pl.BlockSpec((h3_p, d_out_p), const_map),
        pl.BlockSpec((1, d_out_p), const_map),
    ]
    out_spec = pl.BlockSpec((tb, d_out_p), batch_map)

    weight_bytes = sum(int(a.size) * a.dtype.itemsize
                       for a in (w1, b1, w2, b2, w3, b3, w4, b4))
    flops = 2 * b_p * (d_in_p * h1_p + h1_p * h2_p + h2_p * h3_p
                       + h3_p * d_out_p)
    bytes_accessed = (int(xp.size) * xp.dtype.itemsize
                      + weight_bytes
                      + b_p * d_out_p * 4)

    out_padded = pl.pallas_call(
        _mlp_kernel,
        out_shape=jax.ShapeDtypeStruct((b_p, d_out_p), jnp.float32),
        grid=grid,
        in_specs=in_specs,
        out_specs=out_spec,
        compiler_params=pltpu.CompilerParams(
            dimension_semantics=("parallel",),
            vmem_limit_bytes=64 * 1024 * 1024,
        ),
        cost_estimate=pl.CostEstimate(
            flops=flops, transcendentals=0, bytes_accessed=bytes_accessed),
    )(xp, w1, b1, w2, b2, w3, b3, w4, b4)

    # Drop padded batch rows and padded logit lanes.
    return out_padded[:B, :out_dim]


def init_params(key, input_dim, output_dim):
    """Deterministic PyTorch-Linear-style init (uniform(-1/sqrt(fan_in), +))."""
    dims = [(input_dim, 245), (245, 128), (128, 80), (80, output_dim)]
    params = {}
    for i, (fan_in, fan_out) in enumerate(dims, start=1):
        key, kw, kb = jax.random.split(key, 3)
        bound = 1.0 / jnp.sqrt(jnp.float32(fan_in))
        # stored directly as (in, out) == PyTorch weight.T
        params[f"w{i}"] = jax.random.uniform(
            kw, (fan_in, fan_out), jnp.float32, -bound, bound)
        params[f"b{i}"] = jax.random.uniform(
            kb, (1, fan_out), jnp.float32, -bound, bound)
    return params


def reference_forward(x_nchw, params, compute_dtype=jnp.bfloat16):
    """Pure-JAX reference with the same precision policy as the kernel."""
    h = x_nchw.reshape(x_nchw.shape[0], -1).astype(compute_dtype)
    for i in range(1, 5):
        w = params[f"w{i}"].astype(compute_dtype)
        b = params[f"b{i}"].astype(jnp.float32)
        h = jnp.dot(h, w, preferred_element_type=jnp.float32) + b
        if i < 4:
            h = jnp.maximum(h, 0.0).astype(compute_dtype)
    return h


if __name__ == "__main__":
    # Small GTSRB-like setup: batch=2, 4-channel 16x16 images -> input_dim=1024,
    # output_dim=43 classes (GTSRB).
    B, C, H, W = 2, 4, 16, 16
    input_dim = C * H * W
    output_dim = 43

    key = jax.random.PRNGKey(0)
    key, kx = jax.random.split(key)
    x = jax.random.normal(kx, (B, C, H, W), jnp.float32)

    params = init_params(key, input_dim, output_dim)

    out = gtsrb_forward(x, params)
    out = jax.block_until_ready(out)

    ref = reference_forward(x, params)
    assert out.shape == (B, output_dim)
    assert jnp.allclose(out, ref, atol=1e-3, rtol=1e-3), (
        float(jnp.max(jnp.abs(out - ref))))

    print("KERNEL_OK")
</pallas_src>

<mosaic_0001>
module attributes {stable_mosaic.version = 11 : i64} {
  func.func @_mlp_kernel(%arg0: i32, %arg1: memref<8x1024xbf16, #tpu.memory_space<vmem>>, %arg2: memref<1024x256xbf16, #tpu.memory_space<vmem>>, %arg3: memref<1x256xf32, #tpu.memory_space<vmem>>, %arg4: memref<256x128xbf16, #tpu.memory_space<vmem>>, %arg5: memref<1x128xf32, #tpu.memory_space<vmem>>, %arg6: memref<128x128xbf16, #tpu.memory_space<vmem>>, %arg7: memref<1x128xf32, #tpu.memory_space<vmem>>, %arg8: memref<128x128xbf16, #tpu.memory_space<vmem>>, %arg9: memref<1x128xf32, #tpu.memory_space<vmem>>, %arg10: memref<8x128xf32, #tpu.memory_space<vmem>>) attributes {dimension_semantics = [#tpu.dimension_semantics<parallel>], iteration_bounds = array<i64: 1>, scalar_prefetch = 0 : i64, scratch_operands = 0 : i64, tpu.core_type = #tpu.core_type<tc>, window_params = [{transform_indices = @transform_0, window_bounds = array<i64: 8, 1024>}, {pipeline_mode = #tpu.pipeline_mode<synchronous>, transform_indices = @transform_1, window_bounds = array<i64: 1024, 256>}, {pipeline_mode = #tpu.pipeline_mode<synchronous>, transform_indices = @transform_2, window_bounds = array<i64: 1, 256>}, {pipeline_mode = #tpu.pipeline_mode<synchronous>, transform_indices = @transform_3, window_bounds = array<i64: 256, 128>}, {pipeline_mode = #tpu.pipeline_mode<synchronous>, transform_indices = @transform_4, window_bounds = array<i64: 1, 128>}, {pipeline_mode = #tpu.pipeline_mode<synchronous>, transform_indices = @transform_5, window_bounds = array<i64: 128, 128>}, {pipeline_mode = #tpu.pipeline_mode<synchronous>, transform_indices = @transform_6, window_bounds = array<i64: 1, 128>}, {pipeline_mode = #tpu.pipeline_mode<synchronous>, transform_indices = @transform_7, window_bounds = array<i64: 128, 128>}, {pipeline_mode = #tpu.pipeline_mode<synchronous>, transform_indices = @transform_8, window_bounds = array<i64: 1, 128>}, {transform_indices = @transform_9, window_bounds = array<i64: 8, 128>}]} {
    %c0 = arith.constant 0 : index
    %c0_0 = arith.constant 0 : index
    %0 = vector.load %arg1[%c0, %c0_0] : memref<8x1024xbf16, #tpu.memory_space<vmem>>, vector<8x1024xbf16>
    %c0_1 = arith.constant 0 : index
    %c0_2 = arith.constant 0 : index
    %1 = vector.load %arg2[%c0_1, %c0_2] : memref<1024x256xbf16, #tpu.memory_space<vmem>>, vector<1024x256xbf16>
    %cst = arith.constant dense<0.000000e+00> : vector<8x256xf32>
    %2 = tpu.matmul %0, %1, %cst {dimension_numbers = #tpu.dot_dimension_numbers<[1], [0], [0], [1], [0, 0, 1, 1], [], []>} : vector<8x1024xbf16>, vector<1024x256xbf16>, vector<8x256xf32> -> vector<8x256xf32>
    %c0_3 = arith.constant 0 : index
    %c0_4 = arith.constant 0 : index
    %3 = vector.load %arg3[%c0_3, %c0_4] : memref<1x256xf32, #tpu.memory_space<vmem>>, vector<1x256xf32>
    %4 = vector.broadcast %3 : vector<1x256xf32> to vector<8x256xf32>
    %5 = arith.addf %2, %4 : vector<8x256xf32>
    %cst_5 = arith.constant 0.000000e+00 : f32
    %6 = vector.broadcast %cst_5 : f32 to vector<8x256xf32>
    %7 = arith.maximumf %5, %6 : vector<8x256xf32>
    %8 = arith.truncf %7 : vector<8x256xf32> to vector<8x256xbf16>
    %c0_6 = arith.constant 0 : index
    %c0_7 = arith.constant 0 : index
    %9 = vector.load %arg4[%c0_6, %c0_7] : memref<256x128xbf16, #tpu.memory_space<vmem>>, vector<256x128xbf16>
    %cst_8 = arith.constant dense<0.000000e+00> : vector<8x128xf32>
    %10 = tpu.matmul %8, %9, %cst_8 {dimension_numbers = #tpu.dot_dimension_numbers<[1], [0], [0], [1], [0, 0, 1, 1], [], []>} : vector<8x256xbf16>, vector<256x128xbf16>, vector<8x128xf32> -> vector<8x128xf32>
    %c0_9 = arith.constant 0 : index
    %c0_10 = arith.constant 0 : index
    %11 = vector.load %arg5[%c0_9, %c0_10] : memref<1x128xf32, #tpu.memory_space<vmem>>, vector<1x128xf32>
    %12 = vector.broadcast %11 : vector<1x128xf32> to vector<8x128xf32>
    %13 = arith.addf %10, %12 : vector<8x128xf32>
    %cst_11 = arith.constant 0.000000e+00 : f32
    %14 = vector.broadcast %cst_11 : f32 to vector<8x128xf32>
    %15 = arith.maximumf %13, %14 : vector<8x128xf32>
    %16 = arith.truncf %15 : vector<8x128xf32> to vector<8x128xbf16>
    %c0_12 = arith.constant 0 : index
    %c0_13 = arith.constant 0 : index
    %17 = vector.load %arg6[%c0_12, %c0_13] : memref<128x128xbf16, #tpu.memory_space<vmem>>, vector<128x128xbf16>
    %cst_14 = arith.constant dense<0.000000e+00> : vector<8x128xf32>
    %18 = tpu.matmul %16, %17, %cst_14 {dimension_numbers = #tpu.dot_dimension_numbers<[1], [0], [0], [1], [0, 0, 1, 1], [], []>} : vector<8x128xbf16>, vector<128x128xbf16>, vector<8x128xf32> -> vector<8x128xf32>
    %c0_15 = arith.constant 0 : index
    %c0_16 = arith.constant 0 : index
    %19 = vector.load %arg7[%c0_15, %c0_16] : memref<1x128xf32, #tpu.memory_space<vmem>>, vector<1x128xf32>
    %20 = vector.broadcast %19 : vector<1x128xf32> to vector<8x128xf32>
    %21 = arith.addf %18, %20 : vector<8x128xf32>
    %cst_17 = arith.constant 0.000000e+00 : f32
    %22 = vector.broadcast %cst_17 : f32 to vector<8x128xf32>
    %23 = arith.maximumf %21, %22 : vector<8x128xf32>
    %24 = arith.truncf %23 : vector<8x128xf32> to vector<8x128xbf16>
    %c0_18 = arith.constant 0 : index
    %c0_19 = arith.constant 0 : index
    %25 = vector.load %arg8[%c0_18, %c0_19] : memref<128x128xbf16, #tpu.memory_space<vmem>>, vector<128x128xbf16>
    %cst_20 = arith.constant dense<0.000000e+00> : vector<8x128xf32>
    %26 = tpu.matmul %24, %25, %cst_20 {dimension_numbers = #tpu.dot_dimension_numbers<[1], [0], [0], [1], [0, 0, 1, 1], [], []>} : vector<8x128xbf16>, vector<128x128xbf16>, vector<8x128xf32> -> vector<8x128xf32>
    %c0_21 = arith.constant 0 : index
    %c0_22 = arith.constant 0 : index
    %27 = vector.load %arg9[%c0_21, %c0_22] : memref<1x128xf32, #tpu.memory_space<vmem>>, vector<1x128xf32>
    %28 = vector.broadcast %27 : vector<1x128xf32> to vector<8x128xf32>
    %29 = arith.addf %26, %28 : vector<8x128xf32>
    %c0_23 = arith.constant 0 : index
    %c0_24 = arith.constant 0 : index
    %30 = vector.load %arg10[%c0_23, %c0_24] : memref<8x128xf32, #tpu.memory_space<vmem>>, vector<8x128xf32>
    tpu.vector_store %arg10[%c0_23, %c0_24], %29 {strides = array<i32>} : memref<8x128xf32, #tpu.memory_space<vmem>>, vector<8x128xf32>,
    return
  }
  func.func @transform_0(%arg0: i32) -> (i32, i32) {
    %c0_i32 = arith.constant 0 : i32
    %c0_i32_0 = arith.constant 0 : i32
    return %arg0, %c0_i32 : i32, i32
  }
  func.func @transform_1(%arg0: i32) -> (i32, i32) {
    %c0_i32 = arith.constant 0 : i32
    %c0_i32_0 = arith.constant 0 : i32
    %c0_i32_1 = arith.constant 0 : i32
    return %c0_i32, %c0_i32_0 : i32, i32
  }
  func.func @transform_2(%arg0: i32) -> (i32, i32) {
    %c0_i32 = arith.constant 0 : i32
    %c0_i32_0 = arith.constant 0 : i32
    %c0_i32_1 = arith.constant 0 : i32
    return %c0_i32, %c0_i32_0 : i32, i32
  }
  func.func @transform_3(%arg0: i32) -> (i32, i32) {
    %c0_i32 = arith.constant 0 : i32
    %c0_i32_0 = arith.constant 0 : i32
    %c0_i32_1 = arith.constant 0 : i32
    return %c0_i32, %c0_i32_0 : i32, i32
  }
  func.func @transform_4(%arg0: i32) -> (i32, i32) {
    %c0_i32 = arith.constant 0 : i32
    %c0_i32_0 = arith.constant 0 : i32
    %c0_i32_1 = arith.constant 0 : i32
    return %c0_i32, %c0_i32_0 : i32, i32
  }
  func.func @transform_5(%arg0: i32) -> (i32, i32) {
    %c0_i32 = arith.constant 0 : i32
    %c0_i32_0 = arith.constant 0 : i32
    %c0_i32_1 = arith.constant 0 : i32
    return %c0_i32, %c0_i32_0 : i32, i32
  }
  func.func @transform_6(%arg0: i32) -> (i32, i32) {
    %c0_i32 = arith.constant 0 : i32
    %c0_i32_0 = arith.constant 0 : i32
    %c0_i32_1 = arith.constant 0 : i32
    return %c0_i32, %c0_i32_0 : i32, i32
  }
  func.func @transform_7(%arg0: i32) -> (i32, i32) {
    %c0_i32 = arith.constant 0 : i32
    %c0_i32_0 = arith.constant 0 : i32
    %c0_i32_1 = arith.constant 0 : i32
    return %c0_i32, %c0_i32_0 : i32, i32
  }
  func.func @transform_8(%arg0: i32) -> (i32, i32) {
    %c0_i32 = arith.constant 0 : i32
    %c0_i32_0 = arith.constant 0 : i32
    %c0_i32_1 = arith.constant 0 : i32
    return %c0_i32, %c0_i32_0 : i32, i32
  }
  func.func @transform_9(%arg0: i32) -> (i32, i32) {
    %c0_i32 = arith.constant 0 : i32
    %c0_i32_0 = arith.constant 0 : i32
    return %arg0, %c0_i32 : i32, i32
  }
}

</mosaic_0001>

<llo_original>
// kernel: tpu_custom_call.1
$region0: #{tpu_custom_call.1}
  #allocation0 [shape = 'u32[]', space=smem, size = 0x4, offset = 0x4, fixed_abs, tag = 'smem constant byte address 0x4 - core index']
  #allocation1 [shape = 'u32[144,128]{1,0:T(1,128)}', space=vmem, size = 0x12000, scoped, tag = 'internal scratch']
  %s0 = inlined_call_operand.hbm [shape: bf16[8,1024], index: 0, kind: input, shape index: {}]
  %s1 = inlined_call_operand.hbm [shape: bf16[1024,256], index: 1, kind: input, shape index: {}]
  %s2 = inlined_call_operand.hbm [shape: f32[1,256], index: 2, kind: input, shape index: {}]
  %s3 = inlined_call_operand.hbm [shape: bf16[256,128], index: 3, kind: input, shape index: {}]
  %s4 = inlined_call_operand.hbm [shape: f32[1,128], index: 4, kind: input, shape index: {}]
  %s5 = inlined_call_operand.hbm [shape: bf16[128,128], index: 5, kind: input, shape index: {}]
  %s6 = inlined_call_operand.hbm [shape: f32[1,128], index: 6, kind: input, shape index: {}]
  %s7 = inlined_call_operand.hbm [shape: bf16[128,128], index: 7, kind: input, shape index: {}]
  %s8 = inlined_call_operand.hbm [shape: f32[1,128], index: 8, kind: input, shape index: {}]
  %s9 = inlined_call_operand.hbm [shape: f32[8,128], index: 9, kind: output, shape index: {}]
  %s10 = sld [smem:[#allocation0]]
  $region82: #{tpu_custom_call.1} parent=0
    _
  %s12 = ssub.s32 1, %s10
  %s13 = scalar_select 0, %s12, %s10
  $region1: #{tpu_custom_call.1} parent=0
    #allocation2 [shape = 'u8[16384]{0}', space=vmem, size = 0x4000, scoped, tag = 'input window, operand 0, single buffered']
    #allocation3 [shape = 's32[1]{0}', space=sflag, size = 0x4, scoped, tag = 'scoped memory for tpu_custom_call.1']
    #allocation4 [shape = 's32[1]{0}', space=sflag, size = 0x4, scoped, tag = 'scoped memory for tpu_custom_call.1']
    #allocation5 [shape = 'u8[524288]{0}', space=vmem, size = 0x80000, scoped, tag = 'input window, operand 1, single buffered']
    #allocation6 [shape = 's32[1]{0}', space=sflag, size = 0x4, scoped, tag = 'scoped memory for tpu_custom_call.1']
    #allocation7 [shape = 'u8[1024]{0}', space=vmem, size = 0x400, scoped, tag = 'input window, operand 2, single buffered']
    #allocation8 [shape = 'u8[65536]{0}', space=vmem, size = 0x10000, scoped, tag = 'input window, operand 3, single buffered']
    #allocation9 [shape = 's32[1]{0}', space=sflag, size = 0x4, scoped, tag = 'scoped memory for tpu_custom_call.1']
    #allocation10 [shape = 'u8[512]{0}', space=vmem, size = 0x400, scoped, tag = 'input window, operand 4, single buffered']
    #allocation11 [shape = 'u8[32768]{0}', space=vmem, size = 0x8000, scoped, tag = 'input window, operand 5, single buffered']
    #allocation12 [shape = 's32[1]{0}', space=sflag, size = 0x4, scoped, tag = 'scoped memory for tpu_custom_call.1']
    #allocation13 [shape = 'u8[512]{0}', space=vmem, size = 0x400, scoped, tag = 'input window, operand 6, single buffered']
    #allocation14 [shape = 'u8[32768]{0}', space=vmem, size = 0x8000, scoped, tag = 'input window, operand 7, single buffered']
    #allocation15 [shape = 's32[1]{0}', space=sflag, size = 0x4, scoped, tag = 'scoped memory for tpu_custom_call.1']
    #allocation16 [shape = 'u8[512]{0}', space=vmem, size = 0x400, scoped, tag = 'input window, operand 8, single buffered']
    #allocation17 [shape = 'u8[4096]{0}', space=vmem, size = 0x1000, scoped, tag = 'output window, operand 0, single buffered']
    %14 = vsyncpa [#allocation3], 0
    %15 = vsyncpa [#allocation6], 0
    %16 = vsyncpa [#allocation9], 0
    %17 = vsyncpa [#allocation12], 0
    %18 = vsyncpa [#allocation15], 0
    %19 = vsyncpa [#allocation4], 0
    // Predicated region
    $region2: #{tpu_custom_call.1} parent=1 // pred_check
      _
    $region3: #{tpu_custom_call.1} parent=1 // pred_check_branch
      %21 = sbr.rel (0) target = $region5
    $region4: #{tpu_custom_call.1} parent=1 // pred_region
      %s23 = ssub.s32 512, 512
      %24 = vsyncadd [#allocation3], %s23
      %s26 = sshll.u32 [#allocation2], 4
      %s27 = int_to_ptr.vmem [resolvable:$true] %s26
      %29 = dma.hbm_to_vmem [thread:$0]  %s0, 512, %s27, [#allocation3]
    $region5: #{tpu_custom_call.1} parent=1 // pred_fallthru
      _
    // Predicated region
    $region6: #{tpu_custom_call.1} parent=1 // pred_check
      _
    $region7: #{tpu_custom_call.1} parent=1 // pred_check_branch
      %31 = sbr.rel (0) target = $region9
    $region8: #{tpu_custom_call.1} parent=1 // pred_region
      %s33 = ssub.s32 16384, 16384
      %34 = vsyncadd [#allocation6], %s33
      %s35 = sshll.u32 [#allocation5], 4
      %s36 = int_to_ptr.vmem [resolvable:$true] %s35
      %41 = dma.hbm_to_vmem [thread:$0]  %s1, 16384, %s36, [#allocation6], 128, 128, 8
    $region9: #{tpu_custom_call.1} parent=1 // pred_fallthru
      _
    // Predicated region
    $region10: #{tpu_custom_call.1} parent=1 // pred_check
      _
    $region11: #{tpu_custom_call.1} parent=1 // pred_check_branch
      %43 = sbr.rel (0) target = $region13
    $region12: #{tpu_custom_call.1} parent=1 // pred_region
      %s45 = ssub.s32 32, 32
      %46 = vsyncadd [#allocation6], %s45
      %s48 = sshll.u32 [#allocation7], 4
      %s49 = int_to_ptr.vmem [resolvable:$true] %s48
      %51 = dma.hbm_to_vmem [thread:$0]  %s2, 32, %s49, [#allocation6]
    $region13: #{tpu_custom_call.1} parent=1 // pred_fallthru
      _
    // Predicated region
    $region14: #{tpu_custom_call.1} parent=1 // pred_check
      _
    $region15: #{tpu_custom_call.1} parent=1 // pred_check_branch
      %53 = sbr.rel (0) target = $region17
    $region16: #{tpu_custom_call.1} parent=1 // pred_region
      %s55 = ssub.s32 2048, 2048
      %56 = vsyncadd [#allocation9], %s55
      %s57 = sshll.u32 [#allocation8], 4
      %s58 = int_to_ptr.vmem [resolvable:$true] %s57
      %63 = dma.hbm_to_vmem [thread:$0]  %s3, 2048, %s58, [#allocation9], 64, 64, 4
    $region17: #{tpu_custom_call.1} parent=1 // pred_fallthru
      _
    // Predicated region
    $region18: #{tpu_custom_call.1} parent=1 // pred_check
      _
    $region19: #{tpu_custom_call.1} parent=1 // pred_check_branch
      %65 = sbr.rel (0) target = $region21
    $region20: #{tpu_custom_call.1} parent=1 // pred_region
      %s67 = ssub.s32 16, 16
      %68 = vsyncadd [#allocation9], %s67
      %s70 = sshll.u32 [#allocation10], 4
      %s71 = int_to_ptr.vmem [resolvable:$true] %s70
      %73 = dma.hbm_to_vmem [thread:$0]  %s4, 16, %s71, [#allocation9]
    $region21: #{tpu_custom_call.1} parent=1 // pred_fallthru
      _
    // Predicated region
    $region22: #{tpu_custom_call.1} parent=1 // pred_check
      _
    $region23: #{tpu_custom_call.1} parent=1 // pred_check_branch
      %75 = sbr.rel (0) target = $region25
    $region24: #{tpu_custom_call.1} parent=1 // pred_region
      %s77 = ssub.s32 1024, 1024
      %78 = vsyncadd [#allocation12], %s77
      %s79 = sshll.u32 [#allocation11], 4
      %s80 = int_to_ptr.vmem [resolvable:$true] %s79
      %85 = dma.hbm_to_vmem [thread:$0]  %s5, 1024, %s80, [#allocation12], 64, 64, 4
    $region25: #{tpu_custom_call.1} parent=1 // pred_fallthru
      _
    // Predicated region
    $region26: #{tpu_custom_call.1} parent=1 // pred_check
      _
    $region27: #{tpu_custom_call.1} parent=1 // pred_check_branch
      %87 = sbr.rel (0) target = $region29
    $region28: #{tpu_custom_call.1} parent=1 // pred_region
      %s89 = ssub.s32 16, 16
      %90 = vsyncadd [#allocation12], %s89
      %s92 = sshll.u32 [#allocation13], 4
      %s93 = int_to_ptr.vmem [resolvable:$true] %s92
      %95 = dma.hbm_to_vmem [thread:$0]  %s6, 16, %s93, [#allocation12]
    $region29: #{tpu_custom_call.1} parent=1 // pred_fallthru
      _
    // Predicated region
    $region30: #{tpu_custom_call.1} parent=1 // pred_check
      _
    $region31: #{tpu_custom_call.1} parent=1 // pred_check_branch
      %97 = sbr.rel (0) target = $region33
    $region32: #{tpu_custom_call.1} parent=1 // pred_region
      %s99 = ssub.s32 1024, 1024
      %100 = vsyncadd [#allocation15], %s99
      %s101 = sshll.u32 [#allocation14], 4
      %s102 = int_to_ptr.vmem [resolvable:$true] %s101
      %107 = dma.hbm_to_vmem [thread:$0]  %s7, 1024, %s102, [#allocation15], 64, 64, 4
    $region33: #{tpu_custom_call.1} parent=1 // pred_fallthru
      _
    // Predicated region
    $region34: #{tpu_custom_call.1} parent=1 // pred_check
      _
    $region35: #{tpu_custom_call.1} parent=1 // pred_check_branch
      %109 = sbr.rel (0) target = $region37
    $region36: #{tpu_custom_call.1} parent=1 // pred_region
      %s111 = ssub.s32 16, 16
      %112 = vsyncadd [#allocation15], %s111
      %s114 = sshll.u32 [#allocation16], 4
      %s115 = int_to_ptr.vmem [resolvable:$true] %s114
      %117 = dma.hbm_to_vmem [thread:$0]  %s8, 16, %s115, [#allocation15]
    $region37: #{tpu_custom_call.1} parent=1 // pred_fallthru
      _
    // Predicated region
    $region38: #{tpu_custom_call.1} parent=1 // pred_check
      _
    $region39: #{tpu_custom_call.1} parent=1 // pred_check_branch
      %119 = sbr.rel (0) target = $region41
    $region40: #{tpu_custom_call.1} parent=1 // pred_region
      %120 = dma.done [#allocation3], 512
    $region41: #{tpu_custom_call.1} parent=1 // pred_fallthru
      _
    // Predicated region
    $region42: #{tpu_custom_call.1} parent=1 // pred_check
      _
    $region43: #{tpu_custom_call.1} parent=1 // pred_check_branch
      %122 = sbr.rel (0) target = $region45
    $region44: #{tpu_custom_call.1} parent=1 // pred_region
      %123 = dma.done [#allocation6], 16384
    $region45: #{tpu_custom_call.1} parent=1 // pred_fallthru
      _
    // Predicated region
    $region46: #{tpu_custom_call.1} parent=1 // pred_check
      _
    $region47: #{tpu_custom_call.1} parent=1 // pred_check_branch
      %125 = sbr.rel (0) target = $region49
    $region48: #{tpu_custom_call.1} parent=1 // pred_region
      %126 = dma.done [#allocation6], 32
    $region49: #{tpu_custom_call.1} parent=1 // pred_fallthru
      _
    // Predicated region
    $region50: #{tpu_custom_call.1} parent=1 // pred_check
      _
    $region51: #{tpu_custom_call.1} parent=1 // pred_check_branch
      %128 = sbr.rel (0) target = $region53
    $region52: #{tpu_custom_call.1} parent=1 // pred_region
      %129 = dma.done [#allocation9], 2048
    $region53: #{tpu_custom_call.1} parent=1 // pred_fallthru
      _
    // Predicated region
    $region54: #{tpu_custom_call.1} parent=1 // pred_check
      _
    $region55: #{tpu_custom_call.1} parent=1 // pred_check_branch
      %131 = sbr.rel (0) target = $region57
    $region56: #{tpu_custom_call.1} parent=1 // pred_region
      %132 = dma.done [#allocation9], 16
    $region57: #{tpu_custom_call.1} parent=1 // pred_fallthru
      _
    // Predicated region
    $region58: #{tpu_custom_call.1} parent=1 // pred_check
      _
    $region59: #{tpu_custom_call.1} parent=1 // pred_check_branch
      %134 = sbr.rel (0) target = $region61
    $region60: #{tpu_custom_call.1} parent=1 // pred_region
      %135 = dma.done [#allocation12], 1024
    $region61: #{tpu_custom_call.1} parent=1 // pred_fallthru
      _
    // Predicated region
    $region62: #{tpu_custom_call.1} parent=1 // pred_check
      _
    $region63: #{tpu_custom_call.1} parent=1 // pred_check_branch
      %137 = sbr.rel (0) target = $region65
    $region64: #{tpu_custom_call.1} parent=1 // pred_region
      %138 = dma.done [#allocation12], 16
    $region65: #{tpu_custom_call.1} parent=1 // pred_fallthru
      _
    // Predicated region
    $region66: #{tpu_custom_call.1} parent=1 // pred_check
      _
    $region67: #{tpu_custom_call.1} parent=1 // pred_check_branch
      %140 = sbr.rel (0) target = $region69
    $region68: #{tpu_custom_call.1} parent=1 // pred_region
      %141 = dma.done [#allocation15], 1024
    $region69: #{tpu_custom_call.1} parent=1 // pred_fallthru
      _
    // Predicated region
    $region70: #{tpu_custom_call.1} parent=1 // pred_check
      _
    $region71: #{tpu_custom_call.1} parent=1 // pred_check_branch
      %143 = sbr.rel (0) target = $region73
    $region72: #{tpu_custom_call.1} parent=1 // pred_region
      %144 = dma.done [#allocation15], 16
    $region73: #{tpu_custom_call.1} parent=1 // pred_fallthru
      _
    %v146 = vld [vmem:[#allocation2] sm:$0xff]
    %v147 = vld [vmem:[#allocation2 + $0x8] sm:$0xff]
    %v148 = vld [vmem:[#allocation2 + $0x10] sm:$0xff]
    %v149 = vld [vmem:[#allocation2 + $0x18] sm:$0xff]
    %v150 = vld [vmem:[#allocation5] sm:$0xff]
    %v151 = vld [vmem:[#allocation5 + $0x8] sm:$0xff]
    %v152 = vld [vmem:[#allocation5 + $0x10] sm:$0xff]
    %v153 = vld [vmem:[#allocation5 + $0x18] sm:$0xff]
    %v154 = vld [vmem:[#allocation5 + $0x20] sm:$0xff]
    %v155 = vld [vmem:[#allocation5 + $0x28] sm:$0xff]
    %v156 = vld [vmem:[#allocation5 + $0x30] sm:$0xff]
    %v157 = vld [vmem:[#allocation5 + $0x38] sm:$0xff]
    %v158 = vld [vmem:[#allocation5 + $0x40] sm:$0xff]
    %v159 = vld [vmem:[#allocation5 + $0x48] sm:$0xff]
    %v160 = vld [vmem:[#allocation5 + $0x50] sm:$0xff]
    %v161 = vld [vmem:[#allocation5 + $0x58] sm:$0xff]
    %v162 = vld [vmem:[#allocation5 + $0x60] sm:$0xff]
    %v163 = vld [vmem:[#allocation5 + $0x68] sm:$0xff]
    %v164 = vld [vmem:[#allocation5 + $0x70] sm:$0xff]
    %v165 = vld [vmem:[#allocation5 + $0x78] sm:$0xff]
    %v166 = vld [vmem:[#allocation5 + $0x80] sm:$0xff]
    %v167 = vld [vmem:[#allocation5 + $0x88] sm:$0xff]
    %v168 = vld [vmem:[#allocation5 + $0x90] sm:$0xff]
    %v169 = vld [vmem:[#allocation5 + $0x98] sm:$0xff]
    %v170 = vld [vmem:[#allocation5 + $0xa0] sm:$0xff]
    %v171 = vld [vmem:[#allocation5 + $0xa8] sm:$0xff]
    %v172 = vld [vmem:[#allocation5 + $0xb0] sm:$0xff]
    %v173 = vld [vmem:[#allocation5 + $0xb8] sm:$0xff]
    %v174 = vld [vmem:[#allocation5 + $0xc0] sm:$0xff]
    %v175 = vld [vmem:[#allocation5 + $0xc8] sm:$0xff]
    %v176 = vld [vmem:[#allocation5 + $0xd0] sm:$0xff]
    %v177 = vld [vmem:[#allocation5 + $0xd8] sm:$0xff]
    %v178 = vld [vmem:[#allocation5 + $0xe0] sm:$0xff]
    %v179 = vld [vmem:[#allocation5 + $0xe8] sm:$0xff]
    %v180 = vld [vmem:[#allocation5 + $0xf0] sm:$0xff]
    %v181 = vld [vmem:[#allocation5 + $0xf8] sm:$0xff]
    %v182 = vld [vmem:[#allocation5 + $0x100] sm:$0xff]
    %v183 = vld [vmem:[#allocation5 + $0x108] sm:$0xff]
    %v184 = vld [vmem:[#allocation5 + $0x110] sm:$0xff]
    %v185 = vld [vmem:[#allocation5 + $0x118] sm:$0xff]
    %v186 = vld [vmem:[#allocation5 + $0x120] sm:$0xff]
    %v187 = vld [vmem:[#allocation5 + $0x128] sm:$0xff]
    %v188 = vld [vmem:[#allocation5 + $0x130] sm:$0xff]
    %v189 = vld [vmem:[#allocation5 + $0x138] sm:$0xff]
    %v190 = vld [vmem:[#allocation5 + $0x140] sm:$0xff]
    %v191 = vld [vmem:[#allocation5 + $0x148] sm:$0xff]
    %v192 = vld [vmem:[#allocation5 + $0x150] sm:$0xff]
    %v193 = vld [vmem:[#allocation5 + $0x158] sm:$0xff]
    %v194 = vld [vmem:[#allocation5 + $0x160] sm:$0xff]
    %v195 = vld [vmem:[#allocation5 + $0x168] sm:$0xff]
    %v196 = vld [vmem:[#allocation5 + $0x170] sm:$0xff]
    %v197 = vld [vmem:[#allocation5 + $0x178] sm:$0xff]
    %v198 = vld [vmem:[#allocation5 + $0x180] sm:$0xff]
    %v199 = vld [vmem:[#allocation5 + $0x188] sm:$0xff]
    %v200 = vld [vmem:[#allocation5 + $0x190] sm:$0xff]
    %v201 = vld [vmem:[#allocation5 + $0x198] sm:$0xff]
    %v202 = vld [vmem:[#allocation5 + $0x1a0] sm:$0xff]
    %v203 = vld [vmem:[#allocation5 + $0x1a8] sm:$0xff]
    %v204 = vld [vmem:[#allocation5 + $0x1b0] sm:$0xff]
    %v205 = vld [vmem:[#allocation5 + $0x1b8] sm:$0xff]
    %v206 = vld [vmem:[#allocation5 + $0x1c0] sm:$0xff]
    %v207 = vld [vmem:[#allocation5 + $0x1c8] sm:$0xff]
    %v208 = vld [vmem:[#allocation5 + $0x1d0] sm:$0xff]
    %v209 = vld [vmem:[#allocation5 + $0x1d8] sm:$0xff]
    %v210 = vld [vmem:[#allocation5 + $0x1e0] sm:$0xff]
    %v211 = vld [vmem:[#allocation5 + $0x1e8] sm:$0xff]
    %v212 = vld [vmem:[#allocation5 + $0x1f0] sm:$0xff]
    %v213 = vld [vmem:[#allocation5 + $0x1f8] sm:$0xff]
    %v214 = vld [vmem:[#allocation5 + $0x200] sm:$0xff]
    %v215 = vld [vmem:[#allocation5 + $0x208] sm:$0xff]
    %v216 = vld [vmem:[#allocation5 + $0x210] sm:$0xff]
    %v217 = vld [vmem:[#allocation5 + $0x218] sm:$0xff]
    %v218 = vld [vmem:[#allocation5 + $0x220] sm:$0xff]
    %v219 = vld [vmem:[#allocation5 + $0x228] sm:$0xff]
    %v220 = vld [vmem:[#allocation5 + $0x230] sm:$0xff]
    %v221 = vld [vmem:[#allocation5 + $0x238] sm:$0xff]
    %v222 = vld [vmem:[#allocation5 + $0x240] sm:$0xff]
    %v223 = vld [vmem:[#allocation5 + $0x248] sm:$0xff]
    %v224 = vld [vmem:[#allocation5 + $0x250] sm:$0xff]
    %v225 = vld [vmem:[#allocation5 + $0x258] sm:$0xff]
    %v226 = vld [vmem:[#allocation5 + $0x260] sm:$0xff]
    %v227 = vld [vmem:[#allocation5 + $0x268] sm:$0xff]
    %v228 = vld [vmem:[#allocation5 + $0x270] sm:$0xff]
    %v229 = vld [vmem:[#allocation5 + $0x278] sm:$0xff]
    %v230 = vld [vmem:[#allocation5 + $0x280] sm:$0xff]
    %v231 = vld [vmem:[#allocation5 + $0x288] sm:$0xff]
    %v232 = vld [vmem:[#allocation5 + $0x290] sm:$0xff]
    %v233 = vld [vmem:[#allocation5 + $0x298] sm:$0xff]
    %v234 = vld [vmem:[#allocation5 + $0x2a0] sm:$0xff]
    %v235 = vld [vmem:[#allocation5 + $0x2a8] sm:$0xff]
    %v236 = vld [vmem:[#allocation5 + $0x2b0] sm:$0xff]
    %v237 = vld [vmem:[#allocation5 + $0x2b8] sm:$0xff]
    %v238 = vld [vmem:[#allocation5 + $0x2c0] sm:$0xff]
    %v239 = vld [vmem:[#allocation5 + $0x2c8] sm:$0xff]
    %v240 = vld [vmem:[#allocation5 + $0x2d0] sm:$0xff]
    %v241 = vld [vmem:[#allocation5 + $0x2d8] sm:$0xff]
    %v242 = vld [vmem:[#allocation5 + $0x2e0] sm:$0xff]
    %v243 = vld [vmem:[#allocation5 + $0x2e8] sm:$0xff]
    %v244 = vld [vmem:[#allocation5 + $0x2f0] sm:$0xff]
    %v245 = vld [vmem:[#allocation5 + $0x2f8] sm:$0xff]
    %v246 = vld [vmem:[#allocation5 + $0x300] sm:$0xff]
    %v247 = vld [vmem:[#allocation5 + $0x308] sm:$0xff]
    %v248 = vld [vmem:[#allocation5 + $0x310] sm:$0xff]
    %v249 = vld [vmem:[#allocation5 + $0x318] sm:$0xff]
    %v250 = vld [vmem:[#allocation5 + $0x320] sm:$0xff]
    %v251 = vld [vmem:[#allocation5 + $0x328] sm:$0xff]
    %v252 = vld [vmem:[#allocation5 + $0x330] sm:$0xff]
    %v253 = vld [vmem:[#allocation5 + $0x338] sm:$0xff]
    %v254 = vld [vmem:[#allocation5 + $0x340] sm:$0xff]
    %v255 = vld [vmem:[#allocation5 + $0x348] sm:$0xff]
    %v256 = vld [vmem:[#allocation5 + $0x350] sm:$0xff]
    %v257 = vld [vmem:[#allocation5 + $0x358] sm:$0xff]
    %v258 = vld [vmem:[#allocation5 + $0x360] sm:$0xff]
    %v259 = vld [vmem:[#allocation5 + $0x368] sm:$0xff]
    %v260 = vld [vmem:[#allocation5 + $0x370] sm:$0xff]
    %v261 = vld [vmem:[#allocation5 + $0x378] sm:$0xff]
    %v262 = vld [vmem:[#allocation5 + $0x380] sm:$0xff]
    %v263 = vld [vmem:[#allocation5 + $0x388] sm:$0xff]
    %v264 = vld [vmem:[#allocation5 + $0x390] sm:$0xff]
    %v265 = vld [vmem:[#allocation5 + $0x398] sm:$0xff]
    %v266 = vld [vmem:[#allocation5 + $0x3a0] sm:$0xff]
    %v267 = vld [vmem:[#allocation5 + $0x3a8] sm:$0xff]
    %v268 = vld [vmem:[#allocation5 + $0x3b0] sm:$0xff]
    %v269 = vld [vmem:[#allocation5 + $0x3b8] sm:$0xff]
    %v270 = vld [vmem:[#allocation5 + $0x3c0] sm:$0xff]
    %v271 = vld [vmem:[#allocation5 + $0x3c8] sm:$0xff]
    %v272 = vld [vmem:[#allocation5 + $0x3d0] sm:$0xff]
    %v273 = vld [vmem:[#allocation5 + $0x3d8] sm:$0xff]
    %v274 = vld [vmem:[#allocation5 + $0x3e0] sm:$0xff]
    %v275 = vld [vmem:[#allocation5 + $0x3e8] sm:$0xff]
    %v276 = vld [vmem:[#allocation5 + $0x3f0] sm:$0xff]
    %v277 = vld [vmem:[#allocation5 + $0x3f8] sm:$0xff]
    %v278 = vld [vmem:[#allocation7] sm:$0x3]
    %v280 = vlaneseq
    %v281 = vshrl.u32 %v280, 7
    %v282 = vsub.s32 0, %v281
    %v283 = vrot.slane %v278, %v282
    %v284 = vlaneseq
    %v285 = vshrl.u32 %v284, 7
    %v286 = vsub.s32 1, %v285
    %v287 = vrot.slane %v278, %v286
    %v294 = vunpack.c.l.b16 %v146
    %v295 = vunpack.c.h.b16 %v146
    %v296 = vunpack.c.l.b16 %v147
    %v297 = vunpack.c.h.b16 %v147
    %v298 = vunpack.c.l.b16 %v148
    %v299 = vunpack.c.h.b16 %v148
    %v300 = vunpack.c.l.b16 %v149
    %v301 = vunpack.c.h.b16 %v149
    %v302 = vpack.c.b16 %v294, %v294
    %v303 = vpack.c.b16 %v295, %v295
    %v304 = vpack.c.b16 %v296, %v296
    %v305 = vpack.c.b16 %v297, %v297
    %v306 = vpack.c.b16 %v298, %v298
    %v307 = vpack.c.b16 %v299, %v299
    %v308 = vpack.c.b16 %v300, %v300
    %v309 = vpack.c.b16 %v301, %v301
    %v446 = vunpack.c.l.b16 %v150
    %v447 = vunpack.c.h.b16 %v150
    %v448 = vunpack.c.l.b16 %v151
    %v449 = vunpack.c.h.b16 %v151
    %v450 = vunpack.c.l.b16 %v152
    %v451 = vunpack.c.h.b16 %v152
    %v452 = vunpack.c.l.b16 %v153
    %v453 = vunpack.c.h.b16 %v153
    %v454 = vunpack.c.l.b16 %v154
    %v455 = vunpack.c.h.b16 %v154
    %v456 = vunpack.c.l.b16 %v155
    %v457 = vunpack.c.h.b16 %v155
    %v458 = vunpack.c.l.b16 %v156
    %v459 = vunpack.c.h.b16 %v156
    %v460 = vunpack.c.l.b16 %v157
    %v461 = vunpack.c.h.b16 %v157
    %v462 = vunpack.c.l.b16 %v158
    %v463 = vunpack.c.h.b16 %v158
    %v464 = vunpack.c.l.b16 %v159
    %v465 = vunpack.c.h.b16 %v159
    %v466 = vunpack.c.l.b16 %v160
    %v467 = vunpack.c.h.b16 %v160
    %v468 = vunpack.c.l.b16 %v161
    %v469 = vunpack.c.h.b16 %v161
    %v470 = vunpack.c.l.b16 %v162
    %v471 = vunpack.c.h.b16 %v162
    %v472 = vunpack.c.l.b16 %v163
    %v473 = vunpack.c.h.b16 %v163
    %v474 = vunpack.c.l.b16 %v164
    %v475 = vunpack.c.h.b16 %v164
    %v476 = vunpack.c.l.b16 %v165
    %v477 = vunpack.c.h.b16 %v165
    %v478 = vunpack.c.l.b16 %v166
    %v479 = vunpack.c.h.b16 %v166
    %v480 = vunpack.c.l.b16 %v167
    %v481 = vunpack.c.h.b16 %v167
    %v482 = vunpack.c.l.b16 %v168
    %v483 = vunpack.c.h.b16 %v168
    %v484 = vunpack.c.l.b16 %v169
    %v485 = vunpack.c.h.b16 %v169
    %v486 = vunpack.c.l.b16 %v170
    %v487 = vunpack.c.h.b16 %v170
    %v488 = vunpack.c.l.b16 %v171
    %v489 = vunpack.c.h.b16 %v171
    %v490 = vunpack.c.l.b16 %v172
    %v491 = vunpack.c.h.b16 %v172
    %v492 = vunpack.c.l.b16 %v173
    %v493 = vunpack.c.h.b16 %v173
    %v494 = vunpack.c.l.b16 %v174
    %v495 = vunpack.c.h.b16 %v174
    %v496 = vunpack.c.l.b16 %v175
    %v497 = vunpack.c.h.b16 %v175
    %v498 = vunpack.c.l.b16 %v176
    %v499 = vunpack.c.h.b16 %v176
    %v500 = vunpack.c.l.b16 %v177
    %v501 = vunpack.c.h.b16 %v177
    %v502 = vunpack.c.l.b16 %v178
    %v503 = vunpack.c.h.b16 %v178
    %v504 = vunpack.c.l.b16 %v179
    %v505 = vunpack.c.h.b16 %v179
    %v506 = vunpack.c.l.b16 %v180
    %v507 = vunpack.c.h.b16 %v180
    %v508 = vunpack.c.l.b16 %v181
    %v509 = vunpack.c.h.b16 %v181
    %v510 = vunpack.c.l.b16 %v182
    %v511 = vunpack.c.h.b16 %v182
    %v512 = vunpack.c.l.b16 %v183
    %v513 = vunpack.c.h.b16 %v183
    %v514 = vunpack.c.l.b16 %v184
    %v515 = vunpack.c.h.b16 %v184
    %v516 = vunpack.c.l.b16 %v185
    %v517 = vunpack.c.h.b16 %v185
    %v518 = vunpack.c.l.b16 %v186
    %v519 = vunpack.c.h.b16 %v186
    %v520 = vunpack.c.l.b16 %v187
    %v521 = vunpack.c.h.b16 %v187
    %v522 = vunpack.c.l.b16 %v188
    %v523 = vunpack.c.h.b16 %v188
    %v524 = vunpack.c.l.b16 %v189
    %v525 = vunpack.c.h.b16 %v189
    %v526 = vunpack.c.l.b16 %v190
    %v527 = vunpack.c.h.b16 %v190
    %v528 = vunpack.c.l.b16 %v191
    %v529 = vunpack.c.h.b16 %v191
    %v530 = vunpack.c.l.b16 %v192
    %v531 = vunpack.c.h.b16 %v192
    %v532 = vunpack.c.l.b16 %v193
    %v533 = vunpack.c.h.b16 %v193
    %v534 = vunpack.c.l.b16 %v194
    %v535 = vunpack.c.h.b16 %v194
    %v536 = vunpack.c.l.b16 %v195
    %v537 = vunpack.c.h.b16 %v195
    %v538 = vunpack.c.l.b16 %v196
    %v539 = vunpack.c.h.b16 %v196
    %v540 = vunpack.c.l.b16 %v197
    %v541 = vunpack.c.h.b16 %v197
    %v542 = vunpack.c.l.b16 %v198
    %v543 = vunpack.c.h.b16 %v198
    %v544 = vunpack.c.l.b16 %v199
    %v545 = vunpack.c.h.b16 %v199
    %v546 = vunpack.c.l.b16 %v200
    %v547 = vunpack.c.h.b16 %v200
    %v548 = vunpack.c.l.b16 %v201
    %v549 = vunpack.c.h.b16 %v201
    %v550 = vunpack.c.l.b16 %v202
    %v551 = vunpack.c.h.b16 %v202
    %v552 = vunpack.c.l.b16 %v203
    %v553 = vunpack.c.h.b16 %v203
    %v554 = vunpack.c.l.b16 %v204
    %v555 = vunpack.c.h.b16 %v204
    %v556 = vunpack.c.l.b16 %v205
    %v557 = vunpack.c.h.b16 %v205
    %v558 = vunpack.c.l.b16 %v206
    %v559 = vunpack.c.h.b16 %v206
    %v560 = vunpack.c.l.b16 %v207
    %v561 = vunpack.c.h.b16 %v207
    %v562 = vunpack.c.l.b16 %v208
    %v563 = vunpack.c.h.b16 %v208
    %v564 = vunpack.c.l.b16 %v209
    %v565 = vunpack.c.h.b16 %v209
    %v566 = vunpack.c.l.b16 %v210
    %v567 = vunpack.c.h.b16 %v210
    %v568 = vunpack.c.l.b16 %v211
    %v569 = vunpack.c.h.b16 %v211
    %v570 = vunpack.c.l.b16 %v212
    %v571 = vunpack.c.h.b16 %v212
    %v572 = vunpack.c.l.b16 %v213
    %v573 = vunpack.c.h.b16 %v213
    %v574 = vunpack.c.l.b16 %v214
    %v575 = vunpack.c.h.b16 %v214
    %v576 = vunpack.c.l.b16 %v215
    %v577 = vunpack.c.h.b16 %v215
    %v578 = vunpack.c.l.b16 %v216
    %v579 = vunpack.c.h.b16 %v216
    %v580 = vunpack.c.l.b16 %v217
    %v581 = vunpack.c.h.b16 %v217
    %v582 = vunpack.c.l.b16 %v218
    %v583 = vunpack.c.h.b16 %v218
    %v584 = vunpack.c.l.b16 %v219
    %v585 = vunpack.c.h.b16 %v219
    %v586 = vunpack.c.l.b16 %v220
    %v587 = vunpack.c.h.b16 %v220
    %v588 = vunpack.c.l.b16 %v221
    %v589 = vunpack.c.h.b16 %v221
    %v590 = vunpack.c.l.b16 %v222
    %v591 = vunpack.c.h.b16 %v222
    %v592 = vunpack.c.l.b16 %v223
    %v593 = vunpack.c.h.b16 %v223
    %v594 = vunpack.c.l.b16 %v224
    %v595 = vunpack.c.h.b16 %v224
    %v596 = vunpack.c.l.b16 %v225
    %v597 = vunpack.c.h.b16 %v225
    %v598 = vunpack.c.l.b16 %v226
    %v599 = vunpack.c.h.b16 %v226
    %v600 = vunpack.c.l.b16 %v227
    %v601 = vunpack.c.h.b16 %v227
    %v602 = vunpack.c.l.b16 %v228
    %v603 = vunpack.c.h.b16 %v228
    %v604 = vunpack.c.l.b16 %v229
    %v605 = vunpack.c.h.b16 %v229
    %v606 = vunpack.c.l.b16 %v230
    %v607 = vunpack.c.h.b16 %v230
    %v608 = vunpack.c.l.b16 %v231
    %v609 = vunpack.c.h.b16 %v231
    %v610 = vunpack.c.l.b16 %v232
    %v611 = vunpack.c.h.b16 %v232
    %v612 = vunpack.c.l.b16 %v233
    %v613 = vunpack.c.h.b16 %v233
    %v614 = vunpack.c.l.b16 %v234
    %v615 = vunpack.c.h.b16 %v234
    %v616 = vunpack.c.l.b16 %v235
    %v617 = vunpack.c.h.b16 %v235
    %v618 = vunpack.c.l.b16 %v236
    %v619 = vunpack.c.h.b16 %v236
    %v620 = vunpack.c.l.b16 %v237
    %v621 = vunpack.c.h.b16 %v237
    %v622 = vunpack.c.l.b16 %v238
    %v623 = vunpack.c.h.b16 %v238
    %v624 = vunpack.c.l.b16 %v239
    %v625 = vunpack.c.h.b16 %v239
    %v626 = vunpack.c.l.b16 %v240
    %v627 = vunpack.c.h.b16 %v240
    %v628 = vunpack.c.l.b16 %v241
    %v629 = vunpack.c.h.b16 %v241
    %v630 = vunpack.c.l.b16 %v242
    %v631 = vunpack.c.h.b16 %v242
    %v632 = vunpack.c.l.b16 %v243
    %v633 = vunpack.c.h.b16 %v243
    %v634 = vunpack.c.l.b16 %v244
    %v635 = vunpack.c.h.b16 %v244
    %v636 = vunpack.c.l.b16 %v245
    %v637 = vunpack.c.h.b16 %v245
    %v638 = vunpack.c.l.b16 %v246
    %v639 = vunpack.c.h.b16 %v246
    %v640 = vunpack.c.l.b16 %v247
    %v641 = vunpack.c.h.b16 %v247
    %v642 = vunpack.c.l.b16 %v248
    %v643 = vunpack.c.h.b16 %v248
    %v644 = vunpack.c.l.b16 %v249
    %v645 = vunpack.c.h.b16 %v249
    %v646 = vunpack.c.l.b16 %v250
    %v647 = vunpack.c.h.b16 %v250
    %v648 = vunpack.c.l.b16 %v251
    %v649 = vunpack.c.h.b16 %v251
    %v650 = vunpack.c.l.b16 %v252
    %v651 = vunpack.c.h.b16 %v252
    %v652 = vunpack.c.l.b16 %v253
    %v653 = vunpack.c.h.b16 %v253
    %v654 = vunpack.c.l.b16 %v254
    %v655 = vunpack.c.h.b16 %v254
    %v656 = vunpack.c.l.b16 %v255
    %v657 = vunpack.c.h.b16 %v255
    %v658 = vunpack.c.l.b16 %v256
    %v659 = vunpack.c.h.b16 %v256
    %v660 = vunpack.c.l.b16 %v257
    %v661 = vunpack.c.h.b16 %v257
    %v662 = vunpack.c.l.b16 %v258
    %v663 = vunpack.c.h.b16 %v258
    %v664 = vunpack.c.l.b16 %v259
    %v665 = vunpack.c.h.b16 %v259
    %v666 = vunpack.c.l.b16 %v260
    %v667 = vunpack.c.h.b16 %v260
    %v668 = vunpack.c.l.b16 %v261
    %v669 = vunpack.c.h.b16 %v261
    %v670 = vunpack.c.l.b16 %v262
    %v671 = vunpack.c.h.b16 %v262
    %v672 = vunpack.c.l.b16 %v263
    %v673 = vunpack.c.h.b16 %v263
    %v674 = vunpack.c.l.b16 %v264
    %v675 = vunpack.c.h.b16 %v264
    %v676 = vunpack.c.l.b16 %v265
    %v677 = vunpack.c.h.b16 %v265
    %v678 = vunpack.c.l.b16 %v266
    %v679 = vunpack.c.h.b16 %v266
    %v680 = vunpack.c.l.b16 %v267
    %v681 = vunpack.c.h.b16 %v267
    %v682 = vunpack.c.l.b16 %v268
    %v683 = vunpack.c.h.b16 %v268
    %v684 = vunpack.c.l.b16 %v269
    %v685 = vunpack.c.h.b16 %v269
    %v686 = vunpack.c.l.b16 %v270
    %v687 = vunpack.c.h.b16 %v270
    %v688 = vunpack.c.l.b16 %v271
    %v689 = vunpack.c.h.b16 %v271
    %v690 = vunpack.c.l.b16 %v272
    %v691 = vunpack.c.h.b16 %v272
    %v692 = vunpack.c.l.b16 %v273
    %v693 = vunpack.c.h.b16 %v273
    %v694 = vunpack.c.l.b16 %v274
    %v695 = vunpack.c.h.b16 %v274
    %v696 = vunpack.c.l.b16 %v275
    %v697 = vunpack.c.h.b16 %v275
    %v698 = vunpack.c.l.b16 %v276
    %v699 = vunpack.c.h.b16 %v276
    %v700 = vunpack.c.l.b16 %v277
    %v701 = vunpack.c.h.b16 %v277
    %v702 = vpack.c.b16 %v448, %v446
    %v703 = vpack.c.b16 %v449, %v447
    %v704 = vpack.c.b16 %v452, %v450
    %v705 = vpack.c.b16 %v453, %v451
    %v706 = vpack.c.b16 %v456, %v454
    %v707 = vpack.c.b16 %v457, %v455
    %v708 = vpack.c.b16 %v460, %v458
    %v709 = vpack.c.b16 %v461, %v459
    %v710 = vpack.c.b16 %v464, %v462
    %v711 = vpack.c.b16 %v465, %v463
    %v712 = vpack.c.b16 %v468, %v466
    %v713 = vpack.c.b16 %v469, %v467
    %v714 = vpack.c.b16 %v472, %v470
    %v715 = vpack.c.b16 %v473, %v471
    %v716 = vpack.c.b16 %v476, %v474
    %v717 = vpack.c.b16 %v477, %v475
    %v718 = vpack.c.b16 %v480, %v478
    %v719 = vpack.c.b16 %v481, %v479
    %v720 = vpack.c.b16 %v484, %v482
    %v721 = vpack.c.b16 %v485, %v483
    %v722 = vpack.c.b16 %v488, %v486
    %v723 = vpack.c.b16 %v489, %v487
    %v724 = vpack.c.b16 %v492, %v490
    %v725 = vpack.c.b16 %v493, %v491
    %v726 = vpack.c.b16 %v496, %v494
    %v727 = vpack.c.b16 %v497, %v495
    %v728 = vpack.c.b16 %v500, %v498
    %v729 = vpack.c.b16 %v501, %v499
    %v730 = vpack.c.b16 %v504, %v502
    %v731 = vpack.c.b16 %v505, %v503
    %v732 = vpack.c.b16 %v508, %v506
    %v733 = vpack.c.b16 %v509, %v507
    %v734 = vpack.c.b16 %v512, %v510
    %v735 = vpack.c.b16 %v513, %v511
    %v736 = vpack.c.b16 %v516, %v514
    %v737 = vpack.c.b16 %v517, %v515
    %v738 = vpack.c.b16 %v520, %v518
    %v739 = vpack.c.b16 %v521, %v519
    %v740 = vpack.c.b16 %v524, %v522
    %v741 = vpack.c.b16 %v525, %v523
    %v742 = vpack.c.b16 %v528, %v526
    %v743 = vpack.c.b16 %v529, %v527
    %v744 = vpack.c.b16 %v532, %v530
    %v745 = vpack.c.b16 %v533, %v531
    %v746 = vpack.c.b16 %v536, %v534
    %v747 = vpack.c.b16 %v537, %v535
    %v748 = vpack.c.b16 %v540, %v538
    %v749 = vpack.c.b16 %v541, %v539
    %v750 = vpack.c.b16 %v544, %v542
    %v751 = vpack.c.b16 %v545, %v543
    %v752 = vpack.c.b16 %v548, %v546
    %v753 = vpack.c.b16 %v549, %v547
    %v754 = vpack.c.b16 %v552, %v550
    %v755 = vpack.c.b16 %v553, %v551
    %v756 = vpack.c.b16 %v556, %v554
    %v757 = vpack.c.b16 %v557, %v555
    %v758 = vpack.c.b16 %v560, %v558
    %v759 = vpack.c.b16 %v561, %v559
    %v760 = vpack.c.b16 %v564, %v562
    %v761 = vpack.c.b16 %v565, %v563
    %v762 = vpack.c.b16 %v568, %v566
    %v763 = vpack.c.b16 %v569, %v567
    %v764 = vpack.c.b16 %v572, %v570
    %v765 = vpack.c.b16 %v573, %v571
    %v766 = vpack.c.b16 %v576, %v574
    %v767 = vpack.c.b16 %v577, %v575
    %v768 = vpack.c.b16 %v580, %v578
    %v769 = vpack.c.b16 %v581, %v579
    %v770 = vpack.c.b16 %v584, %v582
    %v771 = vpack.c.b16 %v585, %v583
    %v772 = vpack.c.b16 %v588, %v586
    %v773 = vpack.c.b16 %v589, %v587
    %v774 = vpack.c.b16 %v592, %v590
    %v775 = vpack.c.b16 %v593, %v591
    %v776 = vpack.c.b16 %v596, %v594
    %v777 = vpack.c.b16 %v597, %v595
    %v778 = vpack.c.b16 %v600, %v598
    %v779 = vpack.c.b16 %v601, %v599
    %v780 = vpack.c.b16 %v604, %v602
    %v781 = vpack.c.b16 %v605, %v603
    %v782 = vpack.c.b16 %v608, %v606
    %v783 = vpack.c.b16 %v609, %v607
    %v784 = vpack.c.b16 %v612, %v610
    %v785 = vpack.c.b16 %v613, %v611
    %v786 = vpack.c.b16 %v616, %v614
    %v787 = vpack.c.b16 %v617, %v615
    %v788 = vpack.c.b16 %v620, %v618
    %v789 = vpack.c.b16 %v621, %v619
    %v790 = vpack.c.b16 %v624, %v622
    %v791 = vpack.c.b16 %v625, %v623
    %v792 = vpack.c.b16 %v628, %v626
    %v793 = vpack.c.b16 %v629, %v627
    %v794 = vpack.c.b16 %v632, %v630
    %v795 = vpack.c.b16 %v633, %v631
    %v796 = vpack.c.b16 %v636, %v634
    %v797 = vpack.c.b16 %v637, %v635
    %v798 = vpack.c.b16 %v640, %v638
    %v799 = vpack.c.b16 %v641, %v639
    %v800 = vpack.c.b16 %v644, %v642
    %v801 = vpack.c.b16 %v645, %v643
    %v802 = vpack.c.b16 %v648, %v646
    %v803 = vpack.c.b16 %v649, %v647
    %v804 = vpack.c.b16 %v652, %v650
    %v805 = vpack.c.b16 %v653, %v651
    %v806 = vpack.c.b16 %v656, %v654
    %v807 = vpack.c.b16 %v657, %v655
    %v808 = vpack.c.b16 %v660, %v658
    %v809 = vpack.c.b16 %v661, %v659
    %v810 = vpack.c.b16 %v664, %v662
    %v811 = vpack.c.b16 %v665, %v663
    %v812 = vpack.c.b16 %v668, %v666
    %v813 = vpack.c.b16 %v669, %v667
    %v814 = vpack.c.b16 %v672, %v670
    %v815 = vpack.c.b16 %v673, %v671
    %v816 = vpack.c.b16 %v676, %v674
    %v817 = vpack.c.b16 %v677, %v675
    %v818 = vpack.c.b16 %v680, %v678
    %v819 = vpack.c.b16 %v681, %v679
    %v820 = vpack.c.b16 %v684, %v682
    %v821 = vpack.c.b16 %v685, %v683
    %v822 = vpack.c.b16 %v688, %v686
    %v823 = vpack.c.b16 %v689, %v687
    %v824 = vpack.c.b16 %v692, %v690
    %v825 = vpack.c.b16 %v693, %v691
    %v826 = vpack.c.b16 %v696, %v694
    %v827 = vpack.c.b16 %v697, %v695
    %v828 = vpack.c.b16 %v700, %v698
    %v829 = vpack.c.b16 %v701, %v699
    %958 = vmatprep.subr.bf16.mxu0 %v703
    %959 = vmatpush1.bf16.msra.mxu0 %v702
    %960 = vmatprep.subr.bf16.mxu0 %v705
    %961 = vmatpush1.bf16.msra.mxu0 %v704
    %962 = vmatprep.subr.bf16.mxu0 %v707
    %963 = vmatpush1.bf16.msra.mxu0 %v706
    %964 = vmatprep.subr.bf16.mxu0 %v709
    %965 = vmatpush1.bf16.msra.mxu0 %v708
    %966 = vmatprep.subr.bf16.mxu0 %v711
    %967 = vmatpush1.bf16.msra.mxu0 %v710
    %968 = vmatprep.subr.bf16.mxu0 %v713
    %969 = vmatpush1.bf16.msra.mxu0 %v712
    %970 = vmatprep.subr.bf16.mxu0 %v715
    %971 = vmatpush1.bf16.msra.mxu0 %v714
    %972 = vmatprep.subr.bf16.mxu0 %v717
    %973 = vmatpush1.bf16.msra.mxu0 %v716
    %974 = vmatprep.subr.bf16.mxu0 %v719
    %975 = vmatpush1.bf16.msra.mxu0 %v718
    %976 = vmatprep.subr.bf16.mxu0 %v721
    %977 = vmatpush1.bf16.msra.mxu0 %v720
    %978 = vmatprep.subr.bf16.mxu0 %v723
    %979 = vmatpush1.bf16.msra.mxu0 %v722
    %980 = vmatprep.subr.bf16.mxu0 %v725
    %981 = vmatpush1.bf16.msra.mxu0 %v724
    %982 = vmatprep.subr.bf16.mxu0 %v727
    %983 = vmatpush1.bf16.msra.mxu0 %v726
    %984 = vmatprep.subr.bf16.mxu0 %v729
    %985 = vmatpush1.bf16.msra.mxu0 %v728
    %986 = vmatprep.subr.bf16.mxu0 %v731
    %987 = vmatpush1.bf16.msra.mxu0 %v730
    %988 = vmatprep.subr.bf16.mxu0 %v733
    %989 = vmatpush1.bf16.msra.mxu0 %v732
    %990 = vmatprep.mubr.bf16.mxu0 %v303
    %991 = vmatmul.mubr.bf16.gmra.mrb[0].mxu0 %v302
    %v992 = vpop.f32.mrb[0].mxu0
    %v993 = vadd.f32 %v283, %v992
    %v994 = vpop.f32.mrb[0].mxu0
    %v995 = vadd.f32 %v287, %v994
    %v996 = vpop.f32.mrb[0].mxu0
    %v997 = vpop.f32.mrb[0].mxu0
    %998 = vdwg.mxu0
    %999 = vmatprep.subr.bf16.mxu0 %v735
    %1000 = vmatpush1.bf16.msra.mxu0 %v734
    %1001 = vmatprep.subr.bf16.mxu0 %v737
    %1002 = vmatpush1.bf16.msra.mxu0 %v736
    %1003 = vmatprep.subr.bf16.mxu0 %v739
    %1004 = vmatpush1.bf16.msra.mxu0 %v738
    %1005 = vmatprep.subr.bf16.mxu0 %v741
    %1006 = vmatpush1.bf16.msra.mxu0 %v740
    %1007 = vmatprep.subr.bf16.mxu0 %v743
    %1008 = vmatpush1.bf16.msra.mxu0 %v742
    %1009 = vmatprep.subr.bf16.mxu0 %v745
    %1010 = vmatpush1.bf16.msra.mxu0 %v744
    %1011 = vmatprep.subr.bf16.mxu0 %v747
    %1012 = vmatpush1.bf16.msra.mxu0 %v746
    %1013 = vmatprep.subr.bf16.mxu0 %v749
    %1014 = vmatpush1.bf16.msra.mxu0 %v748
    %1015 = vmatprep.subr.bf16.mxu0 %v751
    %1016 = vmatpush1.bf16.msra.mxu0 %v750
    %1017 = vmatprep.subr.bf16.mxu0 %v753
    %1018 = vmatpush1.bf16.msra.mxu0 %v752
    %1019 = vmatprep.subr.bf16.mxu0 %v755
    %1020 = vmatpush1.bf16.msra.mxu0 %v754
    %1021 = vmatprep.subr.bf16.mxu0 %v757
    %1022 = vmatpush1.bf16.msra.mxu0 %v756
    %1023 = vmatprep.subr.bf16.mxu0 %v759
    %1024 = vmatpush1.bf16.msra.mxu0 %v758
    %1025 = vmatprep.subr.bf16.mxu0 %v761
    %1026 = vmatpush1.bf16.msra.mxu0 %v760
    %1027 = vmatprep.subr.bf16.mxu0 %v763
    %1028 = vmatpush1.bf16.msra.mxu0 %v762
    %1029 = vmatprep.subr.bf16.mxu0 %v765
    %1030 = vmatpush1.bf16.msra.mxu0 %v764
    %1031 = vmatprep.mubr.bf16.mxu0 %v305
    %1032 = vmatmul.mubr.bf16.gmra.mrb[0].mxu0 %v304
    %v1033 = vpop.f32.mrb[0].mxu0
    %v1034 = vadd.f32 %v993, %v1033
    %v1035 = vpop.f32.mrb[0].mxu0
    %v1036 = vadd.f32 %v995, %v1035
    %v1037 = vpop.f32.mrb[0].mxu0
    %v1038 = vpop.f32.mrb[0].mxu0
    %1039 = vdwg.mxu0
    %1040 = vmatprep.subr.bf16.mxu0 %v767
    %1041 = vmatpush1.bf16.msra.mxu0 %v766
    %1042 = vmatprep.subr.bf16.mxu0 %v769
    %1043 = vmatpush1.bf16.msra.mxu0 %v768
    %1044 = vmatprep.subr.bf16.mxu0 %v771
    %1045 = vmatpush1.bf16.msra.mxu0 %v770
    %1046 = vmatprep.subr.bf16.mxu0 %v773
    %1047 = vmatpush1.bf16.msra.mxu0 %v772
    %1048 = vmatprep.subr.bf16.mxu0 %v775
    %1049 = vmatpush1.bf16.msra.mxu0 %v774
    %1050 = vmatprep.subr.bf16.mxu0 %v777
    %1051 = vmatpush1.bf16.msra.mxu0 %v776
    %1052 = vmatprep.subr.bf16.mxu0 %v779
    %1053 = vmatpush1.bf16.msra.mxu0 %v778
    %1054 = vmatprep.subr.bf16.mxu0 %v781
    %1055 = vmatpush1.bf16.msra.mxu0 %v780
    %1056 = vmatprep.subr.bf16.mxu0 %v783
    %1057 = vmatpush1.bf16.msra.mxu0 %v782
    %1058 = vmatprep.subr.bf16.mxu0 %v785
    %1059 = vmatpush1.bf16.msra.mxu0 %v784
    %1060 = vmatprep.subr.bf16.mxu0 %v787
    %1061 = vmatpush1.bf16.msra.mxu0 %v786
    %1062 = vmatprep.subr.bf16.mxu0 %v789
    %1063 = vmatpush1.bf16.msra.mxu0 %v788
    %1064 = vmatprep.subr.bf16.mxu0 %v791
    %1065 = vmatpush1.bf16.msra.mxu0 %v790
    %1066 = vmatprep.subr.bf16.mxu0 %v793
    %1067 = vmatpush1.bf16.msra.mxu0 %v792
    %1068 = vmatprep.subr.bf16.mxu0 %v795
    %1069 = vmatpush1.bf16.msra.mxu0 %v794
    %1070 = vmatprep.subr.bf16.mxu0 %v797
    %1071 = vmatpush1.bf16.msra.mxu0 %v796
    %1072 = vmatprep.mubr.bf16.mxu0 %v307
    %1073 = vmatmul.mubr.bf16.gmra.mrb[0].mxu0 %v306
    %v1074 = vpop.f32.mrb[0].mxu0
    %v1075 = vadd.f32 %v1034, %v1074
    %v1076 = vpop.f32.mrb[0].mxu0
    %v1077 = vadd.f32 %v1036, %v1076
    %v1078 = vpop.f32.mrb[0].mxu0
    %v1079 = vpop.f32.mrb[0].mxu0
    %1080 = vdwg.mxu0
    %1081 = vmatprep.subr.bf16.mxu0 %v799
    %1082 = vmatpush1.bf16.msra.mxu0 %v798
    %1083 = vmatprep.subr.bf16.mxu0 %v801
    %1084 = vmatpush1.bf16.msra.mxu0 %v800
    %1085 = vmatprep.subr.bf16.mxu0 %v803
    %1086 = vmatpush1.bf16.msra.mxu0 %v802
    %1087 = vmatprep.subr.bf16.mxu0 %v805
    %1088 = vmatpush1.bf16.msra.mxu0 %v804
    %1089 = vmatprep.subr.bf16.mxu0 %v807
    %1090 = vmatpush1.bf16.msra.mxu0 %v806
    %1091 = vmatprep.subr.bf16.mxu0 %v809
    %1092 = vmatpush1.bf16.msra.mxu0 %v808
    %1093 = vmatprep.subr.bf16.mxu0 %v811
    %1094 = vmatpush1.bf16.msra.mxu0 %v810
    %1095 = vmatprep.subr.bf16.mxu0 %v813
    %1096 = vmatpush1.bf16.msra.mxu0 %v812
    %1097 = vmatprep.subr.bf16.mxu0 %v815
    %1098 = vmatpush1.bf16.msra.mxu0 %v814
    %1099 = vmatprep.subr.bf16.mxu0 %v817
    %1100 = vmatpush1.bf16.msra.mxu0 %v816
    %1101 = vmatprep.subr.bf16.mxu0 %v819
    %1102 = vmatpush1.bf16.msra.mxu0 %v818
    %1103 = vmatprep.subr.bf16.mxu0 %v821
    %1104 = vmatpush1.bf16.msra.mxu0 %v820
    %1105 = vmatprep.subr.bf16.mxu0 %v823
    %1106 = vmatpush1.bf16.msra.mxu0 %v822
    %1107 = vmatprep.subr.bf16.mxu0 %v825
    %1108 = vmatpush1.bf16.msra.mxu0 %v824
    %1109 = vmatprep.subr.bf16.mxu0 %v827
    %1110 = vmatpush1.bf16.msra.mxu0 %v826
    %1111 = vmatprep.subr.bf16.mxu0 %v829
    %1112 = vmatpush1.bf16.msra.mxu0 %v828
    %1113 = vmatprep.mubr.bf16.mxu0 %v309
    %1114 = vmatmul.mubr.bf16.gmra.mrb[0].mxu0 %v308
    %v1115 = vpop.f32.mrb[0].mxu0
    %v1116 = vadd.f32 %v1075, %v1115
    %v1117 = vpop.f32.mrb[0].mxu0
    %v1118 = vadd.f32 %v1077, %v1117
    %v1119 = vpop.f32.mrb[0].mxu0
    %v1120 = vpop.f32.mrb[0].mxu0
    %1121 = vdwg.mxu0
    %v1122 = vmax.f32 %v1116, 0.0
    %v1123 = vmax.f32 %v1118, 0.0
    %v1124 = vpack.c.bf16 %v1122, %v1122
    %v1125 = vpack.c.bf16 %v1123, %v1123
    %v1126 = vld [vmem:[#allocation8] sm:$0xf]
    %v1127 = vld [vmem:[#allocation8 + $0x4] sm:$0xf]
    %v1128 = vld [vmem:[#allocation8 + $0x8] sm:$0xf]
    %v1129 = vld [vmem:[#allocation8 + $0xc] sm:$0xf]
    %v1130 = vld [vmem:[#allocation8 + $0x10] sm:$0xf]
    %v1131 = vld [vmem:[#allocation8 + $0x14] sm:$0xf]
    %v1132 = vld [vmem:[#allocation8 + $0x18] sm:$0xf]
    %v1133 = vld [vmem:[#allocation8 + $0x1c] sm:$0xf]
    %v1134 = vld [vmem:[#allocation8 + $0x20] sm:$0xf]
    %v1135 = vld [vmem:[#allocation8 + $0x24] sm:$0xf]
    %v1136 = vld [vmem:[#allocation8 + $0x28] sm:$0xf]
    %v1137 = vld [vmem:[#allocation8 + $0x2c] sm:$0xf]
    %v1138 = vld [vmem:[#allocation8 + $0x30] sm:$0xf]
    %v1139 = vld [vmem:[#allocation8 + $0x34] sm:$0xf]
    %v1140 = vld [vmem:[#allocation8 + $0x38] sm:$0xf]
    %v1141 = vld [vmem:[#allocation8 + $0x3c] sm:$0xf]
    %v1142 = vld [vmem:[#allocation8 + $0x40] sm:$0xf]
    %v1143 = vld [vmem:[#allocation8 + $0x44] sm:$0xf]
    %v1144 = vld [vmem:[#allocation8 + $0x48] sm:$0xf]
    %v1145 = vld [vmem:[#allocation8 + $0x4c] sm:$0xf]
    %v1146 = vld [vmem:[#allocation8 + $0x50] sm:$0xf]
    %v1147 = vld [vmem:[#allocation8 + $0x54] sm:$0xf]
    %v1148 = vld [vmem:[#allocation8 + $0x58] sm:$0xf]
    %v1149 = vld [vmem:[#allocation8 + $0x5c] sm:$0xf]
    %v1150 = vld [vmem:[#allocation8 + $0x60] sm:$0xf]
    %v1151 = vld [vmem:[#allocation8 + $0x64] sm:$0xf]
    %v1152 = vld [vmem:[#allocation8 + $0x68] sm:$0xf]
    %v1153 = vld [vmem:[#allocation8 + $0x6c] sm:$0xf]
    %v1154 = vld [vmem:[#allocation8 + $0x70] sm:$0xf]
    %v1155 = vld [vmem:[#allocation8 + $0x74] sm:$0xf]
    %v1156 = vld [vmem:[#allocation8 + $0x78] sm:$0xf]
    %v1157 = vld [vmem:[#allocation8 + $0x7c] sm:$0xf]
    %v1158 = vld [vmem:[#allocation10] sm:$0x1]
    %v1160 = vlaneseq
    %v1161 = vshrl.u32 %v1160, 7
    %v1162 = vsub.s32 0, %v1161
    %v1163 = vrot.slane %v1158, %v1162
    %v1197 = vunpack.c.l.b16 %v1126
    %v1198 = vunpack.c.l.b16 %v1127
    %v1199 = vunpack.c.l.b16 %v1128
    %v1200 = vunpack.c.l.b16 %v1129
    %v1201 = vunpack.c.l.b16 %v1130
    %v1202 = vunpack.c.l.b16 %v1131
    %v1203 = vunpack.c.l.b16 %v1132
    %v1204 = vunpack.c.l.b16 %v1133
    %v1205 = vunpack.c.l.b16 %v1134
    %v1206 = vunpack.c.l.b16 %v1135
    %v1207 = vunpack.c.l.b16 %v1136
    %v1208 = vunpack.c.l.b16 %v1137
    %v1209 = vunpack.c.l.b16 %v1138
    %v1210 = vunpack.c.l.b16 %v1139
    %v1211 = vunpack.c.l.b16 %v1140
    %v1212 = vunpack.c.l.b16 %v1141
    %v1213 = vunpack.c.l.b16 %v1142
    %v1214 = vunpack.c.l.b16 %v1143
    %v1215 = vunpack.c.l.b16 %v1144
    %v1216 = vunpack.c.l.b16 %v1145
    %v1217 = vunpack.c.l.b16 %v1146
    %v1218 = vunpack.c.l.b16 %v1147
    %v1219 = vunpack.c.l.b16 %v1148
    %v1220 = vunpack.c.l.b16 %v1149
    %v1221 = vunpack.c.l.b16 %v1150
    %v1222 = vunpack.c.l.b16 %v1151
    %v1223 = vunpack.c.l.b16 %v1152
    %v1224 = vunpack.c.l.b16 %v1153
    %v1225 = vunpack.c.l.b16 %v1154
    %v1226 = vunpack.c.l.b16 %v1155
    %v1227 = vunpack.c.l.b16 %v1156
    %v1228 = vunpack.c.l.b16 %v1157
    %v1229 = vpack.c.b16 %v1198, %v1197
    %v1230 = vpack.c.b16 %v1200, %v1199
    %v1231 = vpack.c.b16 %v1202, %v1201
    %v1232 = vpack.c.b16 %v1204, %v1203
    %v1233 = vpack.c.b16 %v1206, %v1205
    %v1234 = vpack.c.b16 %v1208, %v1207
    %v1235 = vpack.c.b16 %v1210, %v1209
    %v1236 = vpack.c.b16 %v1212, %v1211
    %v1237 = vpack.c.b16 %v1214, %v1213
    %v1238 = vpack.c.b16 %v1216, %v1215
    %v1239 = vpack.c.b16 %v1218, %v1217
    %v1240 = vpack.c.b16 %v1220, %v1219
    %v1241 = vpack.c.b16 %v1222, %v1221
    %v1242 = vpack.c.b16 %v1224, %v1223
    %v1243 = vpack.c.b16 %v1226, %v1225
    %v1244 = vpack.c.b16 %v1228, %v1227
    %1261 = vmatprep.subr.bf16.mxu0 0
    %1262 = vmatpush1.bf16.msra.mxu0 %v1229
    %1263 = vmatprep.subr.bf16.mxu0 0
    %1264 = vmatpush1.bf16.msra.mxu0 %v1230
    %1265 = vmatprep.subr.bf16.mxu0 0
    %1266 = vmatpush1.bf16.msra.mxu0 %v1231
    %1267 = vmatprep.subr.bf16.mxu0 0
    %1268 = vmatpush1.bf16.msra.mxu0 %v1232
    %1269 = vmatprep.subr.bf16.mxu0 0
    %1270 = vmatpush1.bf16.msra.mxu0 %v1233
    %1271 = vmatprep.subr.bf16.mxu0 0
    %1272 = vmatpush1.bf16.msra.mxu0 %v1234
    %1273 = vmatprep.subr.bf16.mxu0 0
    %1274 = vmatpush1.bf16.msra.mxu0 %v1235
    %1275 = vmatprep.subr.bf16.mxu0 0
    %1276 = vmatpush1.bf16.msra.mxu0 %v1236
    %1277 = vmatprep.subr.bf16.mxu0 0
    %1278 = vmatpush1.bf16.msra.mxu0 %v1237
    %1279 = vmatprep.subr.bf16.mxu0 0
    %1280 = vmatpush1.bf16.msra.mxu0 %v1238
    %1281 = vmatprep.subr.bf16.mxu0 0
    %1282 = vmatpush1.bf16.msra.mxu0 %v1239
    %1283 = vmatprep.subr.bf16.mxu0 0
    %1284 = vmatpush1.bf16.msra.mxu0 %v1240
    %1285 = vmatprep.subr.bf16.mxu0 0
    %1286 = vmatpush1.bf16.msra.mxu0 %v1241
    %1287 = vmatprep.subr.bf16.mxu0 0
    %1288 = vmatpush1.bf16.msra.mxu0 %v1242
    %1289 = vmatprep.subr.bf16.mxu0 0
    %1290 = vmatpush1.bf16.msra.mxu0 %v1243
    %1291 = vmatprep.subr.bf16.mxu0 0
    %1292 = vmatpush1.bf16.msra.mxu0 %v1244
    %1293 = vmatprep.mubr.bf16.mxu0 %v1125
    %1294 = vmatmul.mubr.bf16.gmra.mrb[0].mxu0 %v1124
    %v1295 = vpop.f32.mrb[0].mxu0
    %v1296 = vadd.f32 %v1163, %v1295
    %v1297 = vpop.f32.mrb[0].mxu0
    %v1298 = vpop.f32.mrb[0].mxu0
    %v1299 = vpop.f32.mrb[0].mxu0
    %1300 = vdwg.mxu0
    %v1301 = vmax.f32 %v1296, 0.0
    %v1302 = vpack.c.bf16 %v1301, %v1301
    %v1303 = vld [vmem:[#allocation11] sm:$0xf]
    %v1304 = vld [vmem:[#allocation11 + $0x4] sm:$0xf]
    %v1305 = vld [vmem:[#allocation11 + $0x8] sm:$0xf]
    %v1306 = vld [vmem:[#allocation11 + $0xc] sm:$0xf]
    %v1307 = vld [vmem:[#allocation11 + $0x10] sm:$0xf]
    %v1308 = vld [vmem:[#allocation11 + $0x14] sm:$0xf]
    %v1309 = vld [vmem:[#allocation11 + $0x18] sm:$0xf]
    %v1310 = vld [vmem:[#allocation11 + $0x1c] sm:$0xf]
    %v1311 = vld [vmem:[#allocation11 + $0x20] sm:$0xf]
    %v1312 = vld [vmem:[#allocation11 + $0x24] sm:$0xf]
    %v1313 = vld [vmem:[#allocation11 + $0x28] sm:$0xf]
    %v1314 = vld [vmem:[#allocation11 + $0x2c] sm:$0xf]
    %v1315 = vld [vmem:[#allocation11 + $0x30] sm:$0xf]
    %v1316 = vld [vmem:[#allocation11 + $0x34] sm:$0xf]
    %v1317 = vld [vmem:[#allocation11 + $0x38] sm:$0xf]
    %v1318 = vld [vmem:[#allocation11 + $0x3c] sm:$0xf]
    %v1319 = vld [vmem:[#allocation13] sm:$0x1]
    %v1321 = vlaneseq
    %v1322 = vshrl.u32 %v1321, 7
    %v1323 = vsub.s32 0, %v1322
    %v1324 = vrot.slane %v1319, %v1323
    %v1342 = vunpack.c.l.b16 %v1303
    %v1343 = vunpack.c.l.b16 %v1304
    %v1344 = vunpack.c.l.b16 %v1305
    %v1345 = vunpack.c.l.b16 %v1306
    %v1346 = vunpack.c.l.b16 %v1307
    %v1347 = vunpack.c.l.b16 %v1308
    %v1348 = vunpack.c.l.b16 %v1309
    %v1349 = vunpack.c.l.b16 %v1310
    %v1350 = vunpack.c.l.b16 %v1311
    %v1351 = vunpack.c.l.b16 %v1312
    %v1352 = vunpack.c.l.b16 %v1313
    %v1353 = vunpack.c.l.b16 %v1314
    %v1354 = vunpack.c.l.b16 %v1315
    %v1355 = vunpack.c.l.b16 %v1316
    %v1356 = vunpack.c.l.b16 %v1317
    %v1357 = vunpack.c.l.b16 %v1318
    %v1358 = vpack.c.b16 %v1343, %v1342
    %v1359 = vpack.c.b16 %v1345, %v1344
    %v1360 = vpack.c.b16 %v1347, %v1346
    %v1361 = vpack.c.b16 %v1349, %v1348
    %v1362 = vpack.c.b16 %v1351, %v1350
    %v1363 = vpack.c.b16 %v1353, %v1352
    %v1364 = vpack.c.b16 %v1355, %v1354
    %v1365 = vpack.c.b16 %v1357, %v1356
    %1374 = vmatprep.subr.bf16.mxu0 0
    %1375 = vmatpush1.bf16.msra.mxu0 %v1358
    %1376 = vmatprep.subr.bf16.mxu0 0
    %1377 = vmatpush1.bf16.msra.mxu0 %v1359
    %1378 = vmatprep.subr.bf16.mxu0 0
    %1379 = vmatpush1.bf16.msra.mxu0 %v1360
    %1380 = vmatprep.subr.bf16.mxu0 0
    %1381 = vmatpush1.bf16.msra.mxu0 %v1361
    %1382 = vmatprep.subr.bf16.mxu0 0
    %1383 = vmatpush1.bf16.msra.mxu0 %v1362
    %1384 = vmatprep.subr.bf16.mxu0 0
    %1385 = vmatpush1.bf16.msra.mxu0 %v1363
    %1386 = vmatprep.subr.bf16.mxu0 0
    %1387 = vmatpush1.bf16.msra.mxu0 %v1364
    %1388 = vmatprep.subr.bf16.mxu0 0
    %1389 = vmatpush1.bf16.msra.mxu0 %v1365
    %1390 = vmatprep.subr.bf16.mxu0 0
    %1391 = vmatpush1.bf16.msra.mxu0 0
    %1392 = vmatprep.subr.bf16.mxu0 0
    %1393 = vmatpush1.bf16.msra.mxu0 0
    %1394 = vmatprep.subr.bf16.mxu0 0
    %1395 = vmatpush1.bf16.msra.mxu0 0
    %1396 = vmatprep.subr.bf16.mxu0 0
    %1397 = vmatpush1.bf16.msra.mxu0 0
    %1398 = vmatprep.subr.bf16.mxu0 0
    %1399 = vmatpush1.bf16.msra.mxu0 0
    %1400 = vmatprep.subr.bf16.mxu0 0
    %1401 = vmatpush1.bf16.msra.mxu0 0
    %1402 = vmatprep.subr.bf16.mxu0 0
    %1403 = vmatpush1.bf16.msra.mxu0 0
    %1404 = vmatprep.subr.bf16.mxu0 0
    %1405 = vmatpush1.bf16.msra.mxu0 0
    %1406 = vmatprep.mubr.bf16.mxu0 0
    %1407 = vmatmul.mubr.bf16.gmra.mrb[0].mxu0 %v1302
    %v1408 = vpop.f32.mrb[0].mxu0
    %v1409 = vadd.f32 %v1324, %v1408
    %v1410 = vpop.f32.mrb[0].mxu0
    %v1411 = vpop.f32.mrb[0].mxu0
    %v1412 = vpop.f32.mrb[0].mxu0
    %1413 = vdwg.mxu0
    %v1414 = vmax.f32 %v1409, 0.0
    %v1415 = vpack.c.bf16 %v1414, %v1414
    %v1416 = vld [vmem:[#allocation14] sm:$0xf]
    %v1417 = vld [vmem:[#allocation14 + $0x4] sm:$0xf]
    %v1418 = vld [vmem:[#allocation14 + $0x8] sm:$0xf]
    %v1419 = vld [vmem:[#allocation14 + $0xc] sm:$0xf]
    %v1420 = vld [vmem:[#allocation14 + $0x10] sm:$0xf]
    %v1421 = vld [vmem:[#allocation14 + $0x14] sm:$0xf]
    %v1422 = vld [vmem:[#allocation14 + $0x18] sm:$0xf]
    %v1423 = vld [vmem:[#allocation14 + $0x1c] sm:$0xf]
    %v1424 = vld [vmem:[#allocation14 + $0x20] sm:$0xf]
    %v1425 = vld [vmem:[#allocation14 + $0x24] sm:$0xf]
    %v1426 = vld [vmem:[#allocation14 + $0x28] sm:$0xf]
    %v1427 = vld [vmem:[#allocation14 + $0x2c] sm:$0xf]
    %v1428 = vld [vmem:[#allocation14 + $0x30] sm:$0xf]
    %v1429 = vld [vmem:[#allocation14 + $0x34] sm:$0xf]
    %v1430 = vld [vmem:[#allocation14 + $0x38] sm:$0xf]
    %v1431 = vld [vmem:[#allocation14 + $0x3c] sm:$0xf]
    %v1432 = vld [vmem:[#allocation16] sm:$0x1]
    %v1434 = vlaneseq
    %v1435 = vshrl.u32 %v1434, 7
    %v1436 = vsub.s32 0, %v1435
    %v1437 = vrot.slane %v1432, %v1436
    %v1455 = vunpack.c.l.b16 %v1416
    %v1456 = vunpack.c.l.b16 %v1417
    %v1457 = vunpack.c.l.b16 %v1418
    %v1458 = vunpack.c.l.b16 %v1419
    %v1459 = vunpack.c.l.b16 %v1420
    %v1460 = vunpack.c.l.b16 %v1421
    %v1461 = vunpack.c.l.b16 %v1422
    %v1462 = vunpack.c.l.b16 %v1423
    %v1463 = vunpack.c.l.b16 %v1424
    %v1464 = vunpack.c.l.b16 %v1425
    %v1465 = vunpack.c.l.b16 %v1426
    %v1466 = vunpack.c.l.b16 %v1427
    %v1467 = vunpack.c.l.b16 %v1428
    %v1468 = vunpack.c.l.b16 %v1429
    %v1469 = vunpack.c.l.b16 %v1430
    %v1470 = vunpack.c.l.b16 %v1431
    %v1471 = vpack.c.b16 %v1456, %v1455
    %v1472 = vpack.c.b16 %v1458, %v1457
    %v1473 = vpack.c.b16 %v1460, %v1459
    %v1474 = vpack.c.b16 %v1462, %v1461
    %v1475 = vpack.c.b16 %v1464, %v1463
    %v1476 = vpack.c.b16 %v1466, %v1465
    %v1477 = vpack.c.b16 %v1468, %v1467
    %v1478 = vpack.c.b16 %v1470, %v1469
    %1487 = vmatprep.subr.bf16.mxu0 0
    %1488 = vmatpush1.bf16.msra.mxu0 %v1471
    %1489 = vmatprep.subr.bf16.mxu0 0
    %1490 = vmatpush1.bf16.msra.mxu0 %v1472
    %1491 = vmatprep.subr.bf16.mxu0 0
    %1492 = vmatpush1.bf16.msra.mxu0 %v1473
    %1493 = vmatprep.subr.bf16.mxu0 0
    %1494 = vmatpush1.bf16.msra.mxu0 %v1474
    %1495 = vmatprep.subr.bf16.mxu0 0
    %1496 = vmatpush1.bf16.msra.mxu0 %v1475
    %1497 = vmatprep.subr.bf16.mxu0 0
    %1498 = vmatpush1.bf16.msra.mxu0 %v1476
    %1499 = vmatprep.subr.bf16.mxu0 0
    %1500 = vmatpush1.bf16.msra.mxu0 %v1477
    %1501 = vmatprep.subr.bf16.mxu0 0
    %1502 = vmatpush1.bf16.msra.mxu0 %v1478
    %1503 = vmatprep.subr.bf16.mxu0 0
    %1504 = vmatpush1.bf16.msra.mxu0 0
    %1505 = vmatprep.subr.bf16.mxu0 0
    %1506 = vmatpush1.bf16.msra.mxu0 0
    %1507 = vmatprep.subr.bf16.mxu0 0
    %1508 = vmatpush1.bf16.msra.mxu0 0
    %1509 = vmatprep.subr.bf16.mxu0 0
    %1510 = vmatpush1.bf16.msra.mxu0 0
    %1511 = vmatprep.subr.bf16.mxu0 0
    %1512 = vmatpush1.bf16.msra.mxu0 0
    %1513 = vmatprep.subr.bf16.mxu0 0
    %1514 = vmatpush1.bf16.msra.mxu0 0
    %1515 = vmatprep.subr.bf16.mxu0 0
    %1516 = vmatpush1.bf16.msra.mxu0 0
    %1517 = vmatprep.subr.bf16.mxu0 0
    %1518 = vmatpush1.bf16.msra.mxu0 0
    %1519 = vmatprep.mubr.bf16.mxu0 0
    %1520 = vmatmul.mubr.bf16.gmra.mrb[0].mxu0 %v1415
    %v1521 = vpop.f32.mrb[0].mxu0
    %v1522 = vadd.f32 %v1437, %v1521
    %v1523 = vpop.f32.mrb[0].mxu0
    %v1524 = vpop.f32.mrb[0].mxu0
    %v1525 = vpop.f32.mrb[0].mxu0
    %1526 = vdwg.mxu0
    %1527 = vst [vmem:[#allocation17] sm:$0xff] %v1522
    // Predicated region
    $region74: #{tpu_custom_call.1} parent=1 // pred_check
      _
    $region75: #{tpu_custom_call.1} parent=1 // pred_check_branch
      %1529 = sbr.rel (0) target = $region77
    $region76: #{tpu_custom_call.1} parent=1 // pred_region
      %s1531 = ssub.s32 128, 128
      %1532 = vsyncadd [#allocation4], %s1531
      %s1534 = sshll.u32 [#allocation17], 4
      %s1535 = int_to_ptr.vmem [resolvable:$true] %s1534
      %1537 = dma.vmem_to_hbm [thread:$0]  %s1535, 128, %s9, [#allocation4]
    $region77: #{tpu_custom_call.1} parent=1 // pred_fallthru
      _
    // Predicated region
    $region78: #{tpu_custom_call.1} parent=1 // pred_check
      _
    $region79: #{tpu_custom_call.1} parent=1 // pred_check_branch
      %1539 = sbr.rel (0) target = $region81
    $region80: #{tpu_custom_call.1} parent=1 // pred_region
      %1540 = dma.done [#allocation4], 128
    $region81: #{tpu_custom_call.1} parent=1 // pred_fallthru
      _
    %1541 = vsyncpa [#allocation3], 1
    %1542 = vsyncpa [#allocation6], 1
    %1543 = vsyncpa [#allocation9], 1
    %1544 = vsyncpa [#allocation12], 1
    %1545 = vsyncpa [#allocation15], 1
    %1546 = vsyncpa [#allocation4], 1

</llo_original>
